<compile_context>
chip_gen: v7x
topology: tpu7x:2x2x1
jax: 0.10.0
libtpu: 0.0.40
codegen_flags: <defaults>
</compile_context>

<pallas_src>
import jax
import jax.numpy as jnp
from jax.experimental import pallas as pl
from jax.experimental.pallas import tpu as pltpu

NZ = 80        # latent dim from the module (self.nz = 80)
LANE = 128     # lane-tile width; NZ padded up to this
TB_MAX = 1024  # max batch-tile rows


def _round_up(n, m):
    return ((n + m - 1) // m) * m


def _vae_kernel(x_ref, w_ref, b_ref, eps_ref, zmean_ref, zlogvar_ref, latent_ref):
    """One batch tile: fused (z_mean | z_log_var) matmul + reparameterization.

    x_ref:   (TB, 128)   input rows, lanes 80..127 are zero padding
    w_ref:   (128, 256)  [Wm^T | Wv^T], each half zero-padded to 128 lanes
    b_ref:   (1, 256)    [bm | bv], zero-padded likewise
    eps_ref: (TB, 128)   N(0,1) noise, padded lanes are zero
    outputs: (TB, 128)   z_mean, z_log_var, latent (lane-dense stores)
    """
    x = x_ref[...]                                                  # (TB, 128) f32

    # Single fused MXU matmul + one bias add covering both Linear layers.
    y = jnp.dot(x, w_ref[...],
                preferred_element_type=jnp.float32) + b_ref[...]    # (TB, 256)

    # Splits land exactly on the 128-lane vreg tile boundary -> free.
    z_mean = y[:, :LANE]
    z_log_var = y[:, LANE:2 * LANE]

    # Reparameterization: exp goes to the EUP slot, mul/add to the VPU.
    latent = z_mean + jnp.exp(z_log_var * 0.5) * eps_ref[...]

    zmean_ref[...] = z_mean
    zlogvar_ref[...] = z_log_var
    latent_ref[...] = latent


def vae_forward(x, w_mean, b_mean, w_logvar, b_logvar, epsilon):
    """Flattens input to (-1, NZ) and runs the fused, batch-tiled Pallas kernel.

    w_mean / w_logvar are PyTorch-style (out, in) Linear weights.
    epsilon must have shape (B, NZ) where B = x.size // NZ.
    Returns (z_mean, z_log_var, latent), each (B, NZ) float32.
    """
    assert x.size % NZ == 0, "input element count must be a multiple of nz=80"
    x_flat = x.reshape(-1, NZ).astype(jnp.float32)
    B = x_flat.shape[0]
    eps_flat = epsilon.reshape(-1, NZ).astype(jnp.float32)
    assert eps_flat.shape[0] == B, "epsilon must have one row per flattened input row"

    # --- fused, lane-padded parameters (built once per call, tiny) -----------
    wm_t = jnp.transpose(w_mean).astype(jnp.float32)        # (80, 80)
    wv_t = jnp.transpose(w_logvar).astype(jnp.float32)      # (80, 80)
    w_cat = jnp.zeros((LANE, 2 * LANE), jnp.float32)
    w_cat = w_cat.at[:NZ, :NZ].set(wm_t)
    w_cat = w_cat.at[:NZ, LANE:LANE + NZ].set(wv_t)
    b_cat = jnp.zeros((1, 2 * LANE), jnp.float32)
    b_cat = b_cat.at[0, :NZ].set(b_mean.astype(jnp.float32))
    b_cat = b_cat.at[0, LANE:LANE + NZ].set(b_logvar.astype(jnp.float32))

    # --- batch tiling + lane padding of the row-wise operands ----------------
    TB = min(TB_MAX, _round_up(B, 8))       # sublane-aligned batch tile
    B_pad = _round_up(B, TB)                # pad so every grid step is full

    def _pad_rows(a):
        return jnp.pad(a, ((0, B_pad - B), (0, LANE - NZ)))

    x_p = _pad_rows(x_flat)                 # (B_pad, 128)
    eps_p = _pad_rows(eps_flat)             # (B_pad, 128)

    grid = (B_pad // TB,)
    row_spec = pl.BlockSpec((TB, LANE), lambda i: (i, 0))          # tiled over batch
    w_spec = pl.BlockSpec((LANE, 2 * LANE), lambda i: (0, 0))      # VMEM-resident
    b_spec = pl.BlockSpec((1, 2 * LANE), lambda i: (0, 0))         # VMEM-resident

    out_shape = tuple(
        jax.ShapeDtypeStruct((B_pad, LANE), jnp.float32) for _ in range(3))

    zm_p, zv_p, lt_p = pl.pallas_call(
        _vae_kernel,
        out_shape=out_shape,
        grid=grid,
        in_specs=[row_spec, w_spec, b_spec, row_spec],
        out_specs=(row_spec, row_spec, row_spec),
        compiler_params=pltpu.CompilerParams(
            # batch axis is independent -> shard across v7x's two TensorCores;
            # no-op on single-core v5e / v6e.
            dimension_semantics=("parallel",),
        ),
    )(x_p, w_cat, b_cat, eps_p)

    # Strip batch padding and the 48 zero lanes (wrapper-side layout plumbing).
    return zm_p[:B, :NZ], zv_p[:B, :NZ], lt_p[:B, :NZ]


def _reference(x_flat, w_mean, b_mean, w_logvar, b_logvar, eps):
    ref_mean = x_flat @ w_mean.T + b_mean
    ref_logvar = x_flat @ w_logvar.T + b_logvar
    ref_latent = ref_mean + jnp.exp(ref_logvar / 2.0) * eps
    return ref_mean, ref_logvar, ref_latent


if __name__ == "__main__":
    key = jax.random.PRNGKey(0)
    k_x, k_wm, k_bm, k_wv, k_bv, k_eps, k_x2, k_e2 = jax.random.split(key, 8)

    # Deterministic Linear(80, 80) parameters (PyTorch layout: (out, in)).
    bound = 1.0 / (NZ ** 0.5)
    w_mean = jax.random.uniform(k_wm, (NZ, NZ), jnp.float32, -bound, bound)
    b_mean = jax.random.uniform(k_bm, (NZ,), jnp.float32, -bound, bound)
    w_logvar = jax.random.uniform(k_wv, (NZ, NZ), jnp.float32, -bound, bound)
    b_logvar = jax.random.uniform(k_bv, (NZ,), jnp.float32, -bound, bound)

    # --- small example: input (2, 2, 80) -> view(-1, 80) gives B = 4 rows ----
    x = jax.random.normal(k_x, (2, 2, NZ), dtype=jnp.float32)
    B = x.size // NZ
    epsilon = jax.random.normal(k_eps, (B, NZ), dtype=jnp.float32)

    z_mean, z_log_var, latent = vae_forward(
        x, w_mean, b_mean, w_logvar, b_logvar, epsilon)
    jax.block_until_ready((z_mean, z_log_var, latent))

    ref = _reference(x.reshape(-1, NZ), w_mean, b_mean, w_logvar, b_logvar, epsilon)
    assert z_mean.shape == (B, NZ) and z_log_var.shape == (B, NZ) and latent.shape == (B, NZ)
    assert jnp.allclose(z_mean, ref[0], atol=1e-5)
    assert jnp.allclose(z_log_var, ref[1], atol=1e-5)
    assert jnp.allclose(latent, ref[2], atol=1e-5)

    # --- multi-tile check: B = 2048 rows exercises the pipelined grid path ---
    B2 = 2048
    x2 = jax.random.normal(k_x2, (B2, NZ), dtype=jnp.float32)
    eps2 = jax.random.normal(k_e2, (B2, NZ), dtype=jnp.float32)
    out2 = vae_forward(x2, w_mean, b_mean, w_logvar, b_logvar, eps2)
    jax.block_until_ready(out2)
    ref2 = _reference(x2, w_mean, b_mean, w_logvar, b_logvar, eps2)
    for got, want in zip(out2, ref2):
        assert jnp.allclose(got, want, atol=1e-4)

    print("KERNEL_OK")
</pallas_src>

<mosaic_0001>
module attributes {stable_mosaic.version = 11 : i64} {
  func.func @_vae_kernel(%arg0: i32, %arg1: memref<8x128xf32, #tpu.memory_space<vmem>>, %arg2: memref<128x256xf32, #tpu.memory_space<vmem>>, %arg3: memref<1x256xf32, #tpu.memory_space<vmem>>, %arg4: memref<8x128xf32, #tpu.memory_space<vmem>>, %arg5: memref<8x128xf32, #tpu.memory_space<vmem>>, %arg6: memref<8x128xf32, #tpu.memory_space<vmem>>, %arg7: memref<8x128xf32, #tpu.memory_space<vmem>>) attributes {dimension_semantics = [#tpu.dimension_semantics<parallel>], iteration_bounds = array<i64: 1>, scalar_prefetch = 0 : i64, scratch_operands = 0 : i64, tpu.core_type = #tpu.core_type<tc>, window_params = [{transform_indices = @transform_0, window_bounds = array<i64: 8, 128>}, {pipeline_mode = #tpu.pipeline_mode<synchronous>, transform_indices = @transform_1, window_bounds = array<i64: 128, 256>}, {pipeline_mode = #tpu.pipeline_mode<synchronous>, transform_indices = @transform_2, window_bounds = array<i64: 1, 256>}, {transform_indices = @transform_3, window_bounds = array<i64: 8, 128>}, {transform_indices = @transform_4, window_bounds = array<i64: 8, 128>}, {transform_indices = @transform_5, window_bounds = array<i64: 8, 128>}, {transform_indices = @transform_6, window_bounds = array<i64: 8, 128>}]} {
    %c0 = arith.constant 0 : index
    %c0_0 = arith.constant 0 : index
    %0 = vector.load %arg1[%c0, %c0_0] : memref<8x128xf32, #tpu.memory_space<vmem>>, vector<8x128xf32>
    %c0_1 = arith.constant 0 : index
    %c0_2 = arith.constant 0 : index
    %1 = vector.load %arg2[%c0_1, %c0_2] : memref<128x256xf32, #tpu.memory_space<vmem>>, vector<128x256xf32>
    %cst = arith.constant dense<0.000000e+00> : vector<8x256xf32>
    %2 = tpu.matmul %0, %1, %cst {dimension_numbers = #tpu.dot_dimension_numbers<[1], [0], [0], [1], [0, 0, 1, 1], [], []>} : vector<8x128xf32>, vector<128x256xf32>, vector<8x256xf32> -> vector<8x256xf32>
    %c0_3 = arith.constant 0 : index
    %c0_4 = arith.constant 0 : index
    %3 = vector.load %arg3[%c0_3, %c0_4] : memref<1x256xf32, #tpu.memory_space<vmem>>, vector<1x256xf32>
    %4 = vector.broadcast %3 : vector<1x256xf32> to vector<8x256xf32>
    %5 = arith.addf %2, %4 : vector<8x256xf32>
    %6 = vector.extract_strided_slice %5 {offsets = [0, 0], sizes = [8, 128], strides = [1, 1]} : vector<8x256xf32> to vector<8x128xf32>
    %7 = vector.extract_strided_slice %5 {offsets = [0, 128], sizes = [8, 128], strides = [1, 1]} : vector<8x256xf32> to vector<8x128xf32>
    %cst_5 = arith.constant 5.000000e-01 : f32
    %8 = vector.broadcast %cst_5 : f32 to vector<8x128xf32>
    %9 = arith.mulf %7, %8 : vector<8x128xf32>
    %10 = math.exp %9 : vector<8x128xf32>
    %c0_6 = arith.constant 0 : index
    %c0_7 = arith.constant 0 : index
    %11 = vector.load %arg4[%c0_6, %c0_7] : memref<8x128xf32, #tpu.memory_space<vmem>>, vector<8x128xf32>
    %12 = arith.mulf %10, %11 : vector<8x128xf32>
    %13 = arith.addf %6, %12 : vector<8x128xf32>
    %c0_8 = arith.constant 0 : index
    %c0_9 = arith.constant 0 : index
    %14 = vector.load %arg5[%c0_8, %c0_9] : memref<8x128xf32, #tpu.memory_space<vmem>>, vector<8x128xf32>
    tpu.vector_store %arg5[%c0_8, %c0_9], %6 {strides = array<i32>} : memref<8x128xf32, #tpu.memory_space<vmem>>, vector<8x128xf32>,
    %c0_10 = arith.constant 0 : index
    %c0_11 = arith.constant 0 : index
    %15 = vector.load %arg6[%c0_10, %c0_11] : memref<8x128xf32, #tpu.memory_space<vmem>>, vector<8x128xf32>
    tpu.vector_store %arg6[%c0_10, %c0_11], %7 {strides = array<i32>} : memref<8x128xf32, #tpu.memory_space<vmem>>, vector<8x128xf32>,
    %c0_12 = arith.constant 0 : index
    %c0_13 = arith.constant 0 : index
    %16 = vector.load %arg7[%c0_12, %c0_13] : memref<8x128xf32, #tpu.memory_space<vmem>>, vector<8x128xf32>
    tpu.vector_store %arg7[%c0_12, %c0_13], %13 {strides = array<i32>} : memref<8x128xf32, #tpu.memory_space<vmem>>, vector<8x128xf32>,
    return
  }
  func.func @transform_0(%arg0: i32) -> (i32, i32) {
    %c0_i32 = arith.constant 0 : i32
    %c0_i32_0 = arith.constant 0 : i32
    return %arg0, %c0_i32 : i32, i32
  }
  func.func @transform_1(%arg0: i32) -> (i32, i32) {
    %c0_i32 = arith.constant 0 : i32
    %c0_i32_0 = arith.constant 0 : i32
    %c0_i32_1 = arith.constant 0 : i32
    return %c0_i32, %c0_i32_0 : i32, i32
  }
  func.func @transform_2(%arg0: i32) -> (i32, i32) {
    %c0_i32 = arith.constant 0 : i32
    %c0_i32_0 = arith.constant 0 : i32
    %c0_i32_1 = arith.constant 0 : i32
    return %c0_i32, %c0_i32_0 : i32, i32
  }
  func.func @transform_3(%arg0: i32) -> (i32, i32) {
    %c0_i32 = arith.constant 0 : i32
    %c0_i32_0 = arith.constant 0 : i32
    return %arg0, %c0_i32 : i32, i32
  }
  func.func @transform_4(%arg0: i32) -> (i32, i32) {
    %c0_i32 = arith.constant 0 : i32
    %c0_i32_0 = arith.constant 0 : i32
    return %arg0, %c0_i32 : i32, i32
  }
  func.func @transform_5(%arg0: i32) -> (i32, i32) {
    %c0_i32 = arith.constant 0 : i32
    %c0_i32_0 = arith.constant 0 : i32
    return %arg0, %c0_i32 : i32, i32
  }
  func.func @transform_6(%arg0: i32) -> (i32, i32) {
    %c0_i32 = arith.constant 0 : i32
    %c0_i32_0 = arith.constant 0 : i32
    return %arg0, %c0_i32 : i32, i32
  }
}

</mosaic_0001>

<llo_original>
// kernel: tpu_custom_call.1
$region0: #{tpu_custom_call.1}
  #allocation0 [shape = 'u32[]', space=smem, size = 0x4, offset = 0x4, fixed_abs, tag = 'smem constant byte address 0x4 - core index']
  #allocation1 [shape = 'u32[144,128]{1,0:T(1,128)}', space=vmem, size = 0x12000, scoped, tag = 'internal scratch']
  %s0 = inlined_call_operand.hbm [shape: f32[8,128], index: 0, kind: input, shape index: {}]
  %s1 = inlined_call_operand.hbm [shape: f32[128,256], index: 1, kind: input, shape index: {}]
  %s2 = inlined_call_operand.vmem [shape: f32[1,256], index: 2, kind: input, shape index: {}]
  %s3 = inlined_call_operand.vmem [shape: f32[8,128], index: 3, kind: input, shape index: {}]
  %s4 = inlined_call_operand.hbm [shape: f32[8,128], index: 4, kind: output, shape index: {0}]
  %s5 = inlined_call_operand.hbm [shape: f32[8,128], index: 5, kind: output, shape index: {1}]
  %s6 = inlined_call_operand.hbm [shape: f32[8,128], index: 6, kind: output, shape index: {2}]
  %7 = xla_tuple %s4, %s5, %s6
  %s8 = sld [smem:[#allocation0]]
  $region50: #{tpu_custom_call.1} parent=0
    _
  %s10 = ssub.s32 1, %s8
  %s11 = scalar_select 0, %s10, %s8
  $region1: #{tpu_custom_call.1} parent=0
    #allocation2 [shape = 'u8[4096]{0}', space=vmem, size = 0x1000, scoped, tag = 'input window, operand 0, single buffered']
    #allocation3 [shape = 's32[1]{0}', space=sflag, size = 0x4, scoped, tag = 'scoped memory for tpu_custom_call.1']
    #allocation4 [shape = 's32[1]{0}', space=sflag, size = 0x4, scoped, tag = 'scoped memory for tpu_custom_call.1']
    #allocation5 [shape = 'u8[131072]{0}', space=vmem, size = 0x20000, scoped, tag = 'input window, operand 1, single buffered']
    #allocation6 [shape = 's32[1]{0}', space=sflag, size = 0x4, scoped, tag = 'scoped memory for tpu_custom_call.1']
    #allocation7 [shape = 'u8[4096]{0}', space=vmem, size = 0x1000, scoped, tag = 'output window, operand 0, single buffered']
    #allocation8 [shape = 'u8[4096]{0}', space=vmem, size = 0x1000, scoped, tag = 'output window, operand 1, single buffered']
    #allocation9 [shape = 's32[1]{0}', space=sflag, size = 0x4, scoped, tag = 'scoped memory for tpu_custom_call.1']
    #allocation10 [shape = 'u8[4096]{0}', space=vmem, size = 0x1000, scoped, tag = 'output window, operand 2, single buffered']
    %12 = vsyncpa [#allocation3], 0
    %13 = vsyncpa [#allocation6], 0
    %14 = vsyncpa [#allocation4], 0
    %15 = vsyncpa [#allocation9], 0
    // Predicated region
    $region2: #{tpu_custom_call.1} parent=1 // pred_check
      _
    $region3: #{tpu_custom_call.1} parent=1 // pred_check_branch
      %17 = sbr.rel (0) target = $region5
    $region4: #{tpu_custom_call.1} parent=1 // pred_region
      %s19 = ssub.s32 128, 128
      %20 = vsyncadd [#allocation3], %s19
      %s22 = sshll.u32 [#allocation2], 4
      %s23 = int_to_ptr.vmem [resolvable:$true] %s22
      %25 = dma.hbm_to_vmem [thread:$0]  %s0, 128, %s23, [#allocation3]
    $region5: #{tpu_custom_call.1} parent=1 // pred_fallthru
      _
    // Predicated region
    $region6: #{tpu_custom_call.1} parent=1 // pred_check
      _
    $region7: #{tpu_custom_call.1} parent=1 // pred_check_branch
      %27 = sbr.rel (0) target = $region9
    $region8: #{tpu_custom_call.1} parent=1 // pred_region
      %s29 = ssub.s32 4096, 4096
      %30 = vsyncadd [#allocation6], %s29
      %s31 = sshll.u32 [#allocation5], 4
      %s32 = int_to_ptr.vmem [resolvable:$true] %s31
      %37 = dma.hbm_to_vmem [thread:$0]  %s1, 4096, %s32, [#allocation6], 256, 256, 16
    $region9: #{tpu_custom_call.1} parent=1 // pred_fallthru
      _
    // Predicated region
    $region10: #{tpu_custom_call.1} parent=1 // pred_check
      _
    $region11: #{tpu_custom_call.1} parent=1 // pred_check_branch
      %39 = sbr.rel (0) target = $region13
    $region12: #{tpu_custom_call.1} parent=1 // pred_region
      _
    $region13: #{tpu_custom_call.1} parent=1 // pred_fallthru
      _
    // Predicated region
    $region14: #{tpu_custom_call.1} parent=1 // pred_check
      _
    $region15: #{tpu_custom_call.1} parent=1 // pred_check_branch
      %41 = sbr.rel (0) target = $region17
    $region16: #{tpu_custom_call.1} parent=1 // pred_region
      _
    $region17: #{tpu_custom_call.1} parent=1 // pred_fallthru
      _
    // Predicated region
    $region18: #{tpu_custom_call.1} parent=1 // pred_check
      _
    $region19: #{tpu_custom_call.1} parent=1 // pred_check_branch
      %43 = sbr.rel (0) target = $region21
    $region20: #{tpu_custom_call.1} parent=1 // pred_region
      %44 = dma.done [#allocation3], 128
    $region21: #{tpu_custom_call.1} parent=1 // pred_fallthru
      _
    // Predicated region
    $region22: #{tpu_custom_call.1} parent=1 // pred_check
      _
    $region23: #{tpu_custom_call.1} parent=1 // pred_check_branch
      %46 = sbr.rel (0) target = $region25
    $region24: #{tpu_custom_call.1} parent=1 // pred_region
      %47 = dma.done [#allocation6], 4096
    $region25: #{tpu_custom_call.1} parent=1 // pred_fallthru
      _
    %v48 = vld [vmem:[#allocation2] sm:$0xff]
    %v49 = vld [vmem:[#allocation5] sm:$0xff]
    %v50 = vld [vmem:[#allocation5 + $0x8] sm:$0xff]
    %v51 = vld [vmem:[#allocation5 + $0x10] sm:$0xff]
    %v52 = vld [vmem:[#allocation5 + $0x18] sm:$0xff]
    %v53 = vld [vmem:[#allocation5 + $0x20] sm:$0xff]
    %v54 = vld [vmem:[#allocation5 + $0x28] sm:$0xff]
    %v55 = vld [vmem:[#allocation5 + $0x30] sm:$0xff]
    %v56 = vld [vmem:[#allocation5 + $0x38] sm:$0xff]
    %v57 = vld [vmem:[#allocation5 + $0x40] sm:$0xff]
    %v58 = vld [vmem:[#allocation5 + $0x48] sm:$0xff]
    %v59 = vld [vmem:[#allocation5 + $0x50] sm:$0xff]
    %v60 = vld [vmem:[#allocation5 + $0x58] sm:$0xff]
    %v61 = vld [vmem:[#allocation5 + $0x60] sm:$0xff]
    %v62 = vld [vmem:[#allocation5 + $0x68] sm:$0xff]
    %v63 = vld [vmem:[#allocation5 + $0x70] sm:$0xff]
    %v64 = vld [vmem:[#allocation5 + $0x78] sm:$0xff]
    %v65 = vld [vmem:[#allocation5 + $0x80] sm:$0xff]
    %v66 = vld [vmem:[#allocation5 + $0x88] sm:$0xff]
    %v67 = vld [vmem:[#allocation5 + $0x90] sm:$0xff]
    %v68 = vld [vmem:[#allocation5 + $0x98] sm:$0xff]
    %v69 = vld [vmem:[#allocation5 + $0xa0] sm:$0xff]
    %v70 = vld [vmem:[#allocation5 + $0xa8] sm:$0xff]
    %v71 = vld [vmem:[#allocation5 + $0xb0] sm:$0xff]
    %v72 = vld [vmem:[#allocation5 + $0xb8] sm:$0xff]
    %v73 = vld [vmem:[#allocation5 + $0xc0] sm:$0xff]
    %v74 = vld [vmem:[#allocation5 + $0xc8] sm:$0xff]
    %v75 = vld [vmem:[#allocation5 + $0xd0] sm:$0xff]
    %v76 = vld [vmem:[#allocation5 + $0xd8] sm:$0xff]
    %v77 = vld [vmem:[#allocation5 + $0xe0] sm:$0xff]
    %v78 = vld [vmem:[#allocation5 + $0xe8] sm:$0xff]
    %v79 = vld [vmem:[#allocation5 + $0xf0] sm:$0xff]
    %v80 = vld [vmem:[#allocation5 + $0xf8] sm:$0xff]
    %v81 = vld [vmem:[%s2] sm:$0x3]
    %v83 = vlaneseq
    %v84 = vshrl.u32 %v83, 7
    %v85 = vsub.s32 0, %v84
    %v86 = vrot.slane %v81, %v85
    %v87 = vlaneseq
    %v88 = vshrl.u32 %v87, 7
    %v89 = vsub.s32 1, %v88
    %v90 = vrot.slane %v81, %v89
    %93 = vmatprep.subr.mxu0 %v50
    %94 = vmatpush1.msra.mxu0 %v49
    %95 = vmatprep.subr.mxu0 %v52
    %96 = vmatpush1.msra.mxu0 %v51
    %97 = vmatprep.subr.mxu0 %v54
    %98 = vmatpush1.msra.mxu0 %v53
    %99 = vmatprep.subr.mxu0 %v56
    %100 = vmatpush1.msra.mxu0 %v55
    %101 = vmatprep.subr.mxu0 %v58
    %102 = vmatpush1.msra.mxu0 %v57
    %103 = vmatprep.subr.mxu0 %v60
    %104 = vmatpush1.msra.mxu0 %v59
    %105 = vmatprep.subr.mxu0 %v62
    %106 = vmatpush1.msra.mxu0 %v61
    %107 = vmatprep.subr.mxu0 %v64
    %108 = vmatpush1.msra.mxu0 %v63
    %109 = vmatprep.subr.mxu0 %v66
    %110 = vmatpush1.msra.mxu0 %v65
    %111 = vmatprep.subr.mxu0 %v68
    %112 = vmatpush1.msra.mxu0 %v67
    %113 = vmatprep.subr.mxu0 %v70
    %114 = vmatpush1.msra.mxu0 %v69
    %115 = vmatprep.subr.mxu0 %v72
    %116 = vmatpush1.msra.mxu0 %v71
    %117 = vmatprep.subr.mxu0 %v74
    %118 = vmatpush1.msra.mxu0 %v73
    %119 = vmatprep.subr.mxu0 %v76
    %120 = vmatpush1.msra.mxu0 %v75
    %121 = vmatprep.subr.mxu0 %v78
    %122 = vmatpush1.msra.mxu0 %v77
    %123 = vmatprep.subr.mxu0 %v80
    %124 = vmatpush1.msra.mxu0 %v79
    %125 = vmatprep.subr.mxu0 0.0
    %126 = vmatpush1.msra.mxu0 0.0
    %127 = vmatprep.subr.mxu0 0.0
    %128 = vmatpush1.msra.mxu0 0.0
    %129 = vmatprep.subr.mxu0 0.0
    %130 = vmatpush1.msra.mxu0 0.0
    %131 = vmatprep.subr.mxu0 0.0
    %132 = vmatpush1.msra.mxu0 0.0
    %133 = vmatprep.subr.mxu0 0.0
    %134 = vmatpush1.msra.mxu0 0.0
    %135 = vmatprep.subr.mxu0 0.0
    %136 = vmatpush1.msra.mxu0 0.0
    %137 = vmatprep.subr.mxu0 0.0
    %138 = vmatpush1.msra.mxu0 0.0
    %139 = vmatprep.subr.mxu0 0.0
    %140 = vmatpush1.msra.mxu0 0.0
    %141 = vmatprep.subr.mxu0 0.0
    %142 = vmatpush1.msra.mxu0 0.0
    %143 = vmatprep.subr.mxu0 0.0
    %144 = vmatpush1.msra.mxu0 0.0
    %145 = vmatprep.subr.mxu0 0.0
    %146 = vmatpush1.msra.mxu0 0.0
    %147 = vmatprep.subr.mxu0 0.0
    %148 = vmatpush1.msra.mxu0 0.0
    %149 = vmatprep.subr.mxu0 0.0
    %150 = vmatpush1.msra.mxu0 0.0
    %151 = vmatprep.subr.mxu0 0.0
    %152 = vmatpush1.msra.mxu0 0.0
    %153 = vmatprep.subr.mxu0 0.0
    %154 = vmatpush1.msra.mxu0 0.0
    %155 = vmatprep.subr.mxu0 0.0
    %156 = vmatpush1.msra.mxu0 0.0
    %157 = vmatprep.mubr.f32.mxu0 0.0
    %158 = vmatmul.mubr.f32.gmra.mrb[0].mxu0 %v48
    %v159 = vpop.f32.mrb[0].mxu0
    %v160 = vadd.f32 %v86, %v159
    %v161 = vpop.f32.mrb[0].mxu0
    %v162 = vadd.f32 %v90, %v161
    %163 = vdwg.mxu0
    %v164 = vmul.f32 %v162, 0.5
    %v165 = vmul.f32 %v164, 1.442695
    %v166 = vpow.pop %v165
    %v167 = vld [vmem:[%s3] sm:$0xff]
    %v168 = vmul.f32 %v166, %v167
    %v169 = vadd.f32 %v160, %v168
    %170 = vst [vmem:[#allocation7] sm:$0xff] %v160
    %171 = vst [vmem:[#allocation8] sm:$0xff] %v162
    %172 = vst [vmem:[#allocation10] sm:$0xff] %v169
    // Predicated region
    $region26: #{tpu_custom_call.1} parent=1 // pred_check
      _
    $region27: #{tpu_custom_call.1} parent=1 // pred_check_branch
      %174 = sbr.rel (0) target = $region29
    $region28: #{tpu_custom_call.1} parent=1 // pred_region
      %s176 = ssub.s32 128, 128
      %177 = vsyncadd [#allocation4], %s176
      %s179 = sshll.u32 [#allocation7], 4
      %s180 = int_to_ptr.vmem [resolvable:$true] %s179
      %182 = dma.vmem_to_hbm [thread:$0]  %s180, 128, %s4, [#allocation4]
    $region29: #{tpu_custom_call.1} parent=1 // pred_fallthru
      _
    // Predicated region
    $region30: #{tpu_custom_call.1} parent=1 // pred_check
      _
    $region31: #{tpu_custom_call.1} parent=1 // pred_check_branch
      %184 = sbr.rel (0) target = $region33
    $region32: #{tpu_custom_call.1} parent=1 // pred_region
      %s186 = ssub.s32 128, 128
      %187 = vsyncadd [#allocation9], %s186
      %s189 = sshll.u32 [#allocation8], 4
      %s190 = int_to_ptr.vmem [resolvable:$true] %s189
      %192 = dma.vmem_to_hbm [thread:$0]  %s190, 128, %s5, [#allocation9]
    $region33: #{tpu_custom_call.1} parent=1 // pred_fallthru
      _
    // Predicated region
    $region34: #{tpu_custom_call.1} parent=1 // pred_check
      _
    $region35: #{tpu_custom_call.1} parent=1 // pred_check_branch
      %194 = sbr.rel (0) target = $region37
    $region36: #{tpu_custom_call.1} parent=1 // pred_region
      %s196 = ssub.s32 128, 128
      %197 = vsyncadd [#allocation9], %s196
      %s199 = sshll.u32 [#allocation10], 4
      %s200 = int_to_ptr.vmem [resolvable:$true] %s199
      %202 = dma.vmem_to_hbm [thread:$0]  %s200, 128, %s6, [#allocation9]
    $region37: #{tpu_custom_call.1} parent=1 // pred_fallthru
      _
    // Predicated region
    $region38: #{tpu_custom_call.1} parent=1 // pred_check
      _
    $region39: #{tpu_custom_call.1} parent=1 // pred_check_branch
      %204 = sbr.rel (0) target = $region41
    $region40: #{tpu_custom_call.1} parent=1 // pred_region
      %205 = dma.done [#allocation4], 128
    $region41: #{tpu_custom_call.1} parent=1 // pred_fallthru
      _
    // Predicated region
    $region42: #{tpu_custom_call.1} parent=1 // pred_check
      _
    $region43: #{tpu_custom_call.1} parent=1 // pred_check_branch
      %207 = sbr.rel (0) target = $region45
    $region44: #{tpu_custom_call.1} parent=1 // pred_region
      %208 = dma.done [#allocation9], 128
    $region45: #{tpu_custom_call.1} parent=1 // pred_fallthru
      _
    // Predicated region
    $region46: #{tpu_custom_call.1} parent=1 // pred_check
      _
    $region47: #{tpu_custom_call.1} parent=1 // pred_check_branch
      %210 = sbr.rel (0) target = $region49
    $region48: #{tpu_custom_call.1} parent=1 // pred_region
      %211 = dma.done [#allocation9], 128
    $region49: #{tpu_custom_call.1} parent=1 // pred_fallthru
      _
    %212 = vsyncpa [#allocation3], 1
    %213 = vsyncpa [#allocation6], 1
    %214 = vsyncpa [#allocation4], 1
    %215 = vsyncpa [#allocation9], 1

</llo_original>
